<compile_context>
chip_gen: v6e
topology: v6e:2x2x1
jax: 0.10.0
libtpu: 0.0.40
codegen_flags: <defaults>
</compile_context>

<pallas_src>
import functools

import jax
import jax.numpy as jnp
import numpy as np
from jax.experimental import pallas as pl
from jax.experimental.pallas import tpu as pltpu


def _ohem_ce_kernel(logits_ref, labels_ref, loss_ref, part_ref,
                    *, thresh, ignore_lb, hw, tile_q, num_classes):
    t = pl.program_id(1)                                 # pixel-tile index

    lbl = labels_ref[0]                                  # (TQ, 128) int32
    tq, lanes = lbl.shape

    # Pass 1: running max over the class axis. Each class is a dense
    # (TQ, 128) slab -> pure VPU elementwise maximum, no XLU.
    m = logits_ref[0, 0]
    for ci in range(1, num_classes):
        m = jnp.maximum(m, logits_ref[0, ci])

    # Pass 2: accumulate sum-exp (f32) and the label-selected logit together.
    # exp is evaluated in the input dtype (bf16 EUP on bf16 inputs, v6e/v7x);
    # accumulation and selection stay in f32.
    s_exp = jnp.zeros((tq, lanes), jnp.float32)
    sel = jnp.zeros((tq, lanes), jnp.float32)
    for ci in range(num_classes):
        xc = logits_ref[0, ci]
        s_exp = s_exp + jnp.exp(xc - m).astype(jnp.float32)
        sel = jnp.where(lbl == ci, xc.astype(jnp.float32), sel)

    lse = m.astype(jnp.float32) + jnp.log(s_exp)         # (TQ, 128)

    # valid = not-ignored and inside the real (unpadded) pixel range.  The
    # position mask protects against garbage reads in OOB tail blocks.
    row = jax.lax.broadcasted_iota(jnp.int32, (tq, lanes), 0)
    lane = jax.lax.broadcasted_iota(jnp.int32, (tq, lanes), 1)
    pix = (t * tile_q + row) * lanes + lane
    valid = (lbl != ignore_lb) & (pix < hw)

    loss = jnp.where(valid, lse - sel, 0.0)              # per-pixel CE loss
    loss_ref[...] = loss[None]

    # Packed lane-dense per-tile partials (single full-vreg store):
    #   row 0 = sum(hard loss), row 1 = count(hard), row 2 = count(valid),
    #   rows 3..7 = padding to a full (8,128) vreg tile.
    hard = valid & (loss > thresh)
    part = jnp.concatenate([
        jnp.sum(jnp.where(hard, loss, 0.0), axis=0, keepdims=True),
        jnp.sum(hard.astype(jnp.float32), axis=0, keepdims=True),
        jnp.sum(valid.astype(jnp.float32), axis=0, keepdims=True),
        jnp.zeros((5, lanes), jnp.float32),
    ], axis=0)                                           # (8, 128)
    part_ref[...] = part[None, None]


def ohem_ce_loss(logits_nchw, labels_nhw, thresh=0.7, ignore_lb=255,
                 tile_pixels=65536, vmem_budget_bytes=12 * 1024 * 1024):
    """Pallas implementation of OhemCELoss.forward (logits NCHW, labels NHW)."""
    n, c, h, w = logits_nchw.shape
    hw = h * w
    lanes = 128

    logits3d = logits_nchw.reshape(n, c, hw)             # metadata view, no transpose
    labels2d = labels_nhw.reshape(n, hw).astype(jnp.int32)

    hw_pad = pl.cdiv(hw, lanes) * lanes
    if hw_pad != hw:
        # TODO(synk): only hit when H*W is not a multiple of 128; this pad
        # materializes one copy of the logits.
        logits3d = jnp.pad(logits3d, ((0, 0), (0, 0), (0, hw_pad - hw)))
        labels2d = jnp.pad(labels2d, ((0, 0), (0, hw_pad - hw)),
                           constant_values=ignore_lb)

    q = hw_pad // lanes                                   # sublane rows / image
    logits4d = logits3d.reshape(n, c, q, lanes)           # (N, C, Q, 128)
    labels3d = labels2d.reshape(n, q, lanes)              # (N, Q, 128)

    # Pixel-tile size (TQ sublane rows = TQ*128 pixels / grid step).  Cap so
    # the double-buffered working set stays inside the VMEM budget.
    itemsize = jnp.dtype(logits_nchw.dtype).itemsize
    per_row_bytes = 2 * lanes * (c * itemsize + 4 + 4)    # logits + labels + loss, x2 buffers
    tq_cap = max(8, (vmem_budget_bytes // per_row_bytes) // 8 * 8)
    tq = max(8, tile_pixels // lanes)
    tq = min(tq, tq_cap)
    if tq >= q:
        tq = q                        # full-extent block is always legal
    else:
        tq = max(8, (tq // 8) * 8)    # (8,128) sublane granularity
    n_tiles = pl.cdiv(q, tq)

    thresh_val = float(-np.log(np.float32(thresh)))       # f32 log, matches torch
    kernel = functools.partial(_ohem_ce_kernel, thresh=thresh_val,
                               ignore_lb=ignore_lb, hw=hw, tile_q=tq,
                               num_classes=c)

    cost = pl.CostEstimate(
        flops=int(6 * c * n * hw_pad),
        transcendentals=int((c + 1) * n * hw_pad),
        bytes_accessed=int(n * hw_pad * (c * itemsize + 4 + 4)
                           + n * n_tiles * 8 * lanes * 4),
    )

    loss_out, part = pl.pallas_call(
        kernel,
        out_shape=(
            jax.ShapeDtypeStruct((n, q, lanes), jnp.float32),          # per-pixel loss
            jax.ShapeDtypeStruct((n, n_tiles, 8, lanes), jnp.float32), # packed partials
        ),
        grid_spec=pltpu.PrefetchScalarGridSpec(
            num_scalar_prefetch=0,
            grid=(n, n_tiles),
            in_specs=[
                pl.BlockSpec((1, c, tq, lanes), lambda nn, t: (nn, 0, t, 0)),
                pl.BlockSpec((1, tq, lanes), lambda nn, t: (nn, t, 0)),
            ],
            out_specs=(
                pl.BlockSpec((1, tq, lanes), lambda nn, t: (nn, t, 0)),
                pl.BlockSpec((1, 1, 8, lanes), lambda nn, t: (nn, t, 0, 0)),
            ),
        ),
        compiler_params=pltpu.CompilerParams(
            # TODO(synk): on v7x, verify in the trace that the grid really
            # splits across both TensorCores; if not, move the tile axis to
            # pltpu.CORE_PARALLEL.
            dimension_semantics=("parallel", "parallel"),
            vmem_limit_bytes=32 * 1024 * 1024),
        cost_estimate=cost,
    )(logits4d, labels3d)

    # Tiny final reductions in plain JAX.
    sum_hard = jnp.sum(part[:, :, 0, :])
    cnt_hard = jnp.sum(part[:, :, 1, :])
    cnt_valid = jnp.sum(part[:, :, 2, :])

    n_min = jnp.floor(cnt_valid * 0.25).astype(jnp.int32)
    # Guarded against empty hard set / all-ignored batch (torch would give NaN
    # from a mean over an empty tensor) — intentional, documented deviation.
    mean_hard = sum_hard / jnp.maximum(cnt_hard, 1.0)

    p = n * hw
    k_static = max(1, p // 4)         # static upper bound on n_min (25% of pixels)

    def _topk_mean():
        # Only materialized when the fallback actually fires.
        loss_flat = loss_out.reshape(n, hw_pad)[:, :hw].reshape(-1)
        # TODO(synk): a histogram / radix-select over loss_out would avoid the
        # near-full sort that lax.top_k implies at full label-map resolution;
        # kept exact (bounded static-k top_k) here and gated behind lax.cond.
        topv, _ = jax.lax.top_k(loss_flat, k_static)
        s = jnp.sum(jnp.where(jnp.arange(k_static) < n_min, topv, 0.0))
        return s / jnp.maximum(n_min, 1).astype(jnp.float32)

    return jax.lax.cond(cnt_hard < n_min.astype(jnp.float32),
                        _topk_mean, lambda: mean_hard)


def _ref_ohem(logits, labels, thresh=0.7, ignore_lb=255):
    """Pure numpy reference mirroring the PyTorch module."""
    logits = np.asarray(logits, dtype=np.float32)
    labels = np.asarray(labels)
    n, c, h, w = logits.shape
    x = np.transpose(logits, (0, 2, 3, 1)).reshape(-1, c)
    lbl = labels.reshape(-1)
    m = x.max(-1, keepdims=True)
    lse = (m + np.log(np.exp(x - m).sum(-1, keepdims=True)))[:, 0]
    valid = lbl != ignore_lb
    sel = x[np.arange(x.shape[0]), np.clip(lbl, 0, c - 1)]
    loss = np.where(valid, lse - sel, 0.0)
    th = -np.log(np.float32(thresh))
    n_min = int(int(valid.sum()) * 0.25)
    hard = loss[loss > th]
    if hard.size < n_min:
        hard = np.sort(loss)[::-1][:n_min]
    return np.float32(hard.mean())


if __name__ == "__main__":
    # Small shapes consistent with the module's forward: logits (N,C,H,W),
    # labels (N,H,W) with ignore label 255.
    N, C, H, W = 2, 4, 16, 16
    key = jax.random.PRNGKey(0)
    k1, k2, k3 = jax.random.split(key, 3)

    logits = jax.random.normal(k1, (N, C, H, W), dtype=jnp.float32)
    labels = jax.random.randint(k2, (N, H, W), 0, C, dtype=jnp.int32)
    ignore_mask = jax.random.uniform(k3, (N, H, W)) < 0.1
    labels = jnp.where(ignore_mask, 255, labels)

    # Common path: enough pixels above the threshold -> mean over hard set.
    out = jax.block_until_ready(ohem_ce_loss(logits, labels, thresh=0.7,
                                             ignore_lb=255))
    ref = _ref_ohem(np.asarray(logits), np.asarray(labels), thresh=0.7)
    np.testing.assert_allclose(np.asarray(out), ref, rtol=1e-4, atol=1e-5)

    # Fallback path: threshold so strict that the top-k branch fires.
    out2 = jax.block_until_ready(ohem_ce_loss(logits, labels, thresh=1e-3,
                                              ignore_lb=255))
    ref2 = _ref_ohem(np.asarray(logits), np.asarray(labels), thresh=1e-3)
    np.testing.assert_allclose(np.asarray(out2), ref2, rtol=1e-4, atol=1e-5)

    print("KERNEL_OK")
</pallas_src>

<mosaic_0001>
module attributes {stable_mosaic.version = 11 : i64} {
  func.func @_ohem_ce_kernel(%arg0: i32, %arg1: i32, %arg2: memref<1x4x2x128xf32, #tpu.memory_space<vmem>>, %arg3: memref<1x2x128xi32, #tpu.memory_space<vmem>>, %arg4: memref<1x2x128xf32, #tpu.memory_space<vmem>>, %arg5: memref<1x1x8x128xf32, #tpu.memory_space<vmem>>) attributes {dimension_semantics = [#tpu.dimension_semantics<parallel>, #tpu.dimension_semantics<parallel>], iteration_bounds = array<i64: 2, 1>, scalar_prefetch = 0 : i64, scratch_operands = 0 : i64, tpu.core_type = #tpu.core_type<tc>, window_params = [{transform_indices = @transform_0, window_bounds = array<i64: 1, 4, 2, 128>}, {transform_indices = @transform_1, window_bounds = array<i64: 1, 2, 128>}, {transform_indices = @transform_2, window_bounds = array<i64: 1, 2, 128>}, {transform_indices = @transform_3, window_bounds = array<i64: 1, 1, 8, 128>}]} {
    %c0 = arith.constant 0 : index
    %c0_0 = arith.constant 0 : index
    %c0_1 = arith.constant 0 : index
    %0 = vector.load %arg3[%c0, %c0_0, %c0_1] : memref<1x2x128xi32, #tpu.memory_space<vmem>>, vector<1x2x128xi32>
    %1 = vector.shape_cast %0 : vector<1x2x128xi32> to vector<2x128xi32>
    %c0_2 = arith.constant 0 : index
    %c0_3 = arith.constant 0 : index
    %c0_4 = arith.constant 0 : index
    %c0_5 = arith.constant 0 : index
    %2 = vector.load %arg2[%c0_2, %c0_3, %c0_4, %c0_5] : memref<1x4x2x128xf32, #tpu.memory_space<vmem>>, vector<1x1x2x128xf32>
    %3 = vector.shape_cast %2 : vector<1x1x2x128xf32> to vector<2x128xf32>
    %c0_6 = arith.constant 0 : index
    %c1 = arith.constant 1 : index
    %c0_7 = arith.constant 0 : index
    %c0_8 = arith.constant 0 : index
    %4 = vector.load %arg2[%c0_6, %c1, %c0_7, %c0_8] : memref<1x4x2x128xf32, #tpu.memory_space<vmem>>, vector<1x1x2x128xf32>
    %5 = vector.shape_cast %4 : vector<1x1x2x128xf32> to vector<2x128xf32>
    %6 = arith.maximumf %3, %5 : vector<2x128xf32>
    %c0_9 = arith.constant 0 : index
    %c2 = arith.constant 2 : index
    %c0_10 = arith.constant 0 : index
    %c0_11 = arith.constant 0 : index
    %7 = vector.load %arg2[%c0_9, %c2, %c0_10, %c0_11] : memref<1x4x2x128xf32, #tpu.memory_space<vmem>>, vector<1x1x2x128xf32>
    %8 = vector.shape_cast %7 : vector<1x1x2x128xf32> to vector<2x128xf32>
    %9 = arith.maximumf %6, %8 : vector<2x128xf32>
    %c0_12 = arith.constant 0 : index
    %c3 = arith.constant 3 : index
    %c0_13 = arith.constant 0 : index
    %c0_14 = arith.constant 0 : index
    %10 = vector.load %arg2[%c0_12, %c3, %c0_13, %c0_14] : memref<1x4x2x128xf32, #tpu.memory_space<vmem>>, vector<1x1x2x128xf32>
    %11 = vector.shape_cast %10 : vector<1x1x2x128xf32> to vector<2x128xf32>
    %12 = arith.maximumf %9, %11 : vector<2x128xf32>
    %cst = arith.constant 0.000000e+00 : f32
    %13 = vector.broadcast %cst : f32 to vector<2x128xf32>
    %cst_15 = arith.constant 0.000000e+00 : f32
    %14 = vector.broadcast %cst_15 : f32 to vector<2x128xf32>
    %c0_16 = arith.constant 0 : index
    %c0_17 = arith.constant 0 : index
    %c0_18 = arith.constant 0 : index
    %c0_19 = arith.constant 0 : index
    %15 = vector.load %arg2[%c0_16, %c0_17, %c0_18, %c0_19] : memref<1x4x2x128xf32, #tpu.memory_space<vmem>>, vector<1x1x2x128xf32>
    %16 = vector.shape_cast %15 : vector<1x1x2x128xf32> to vector<2x128xf32>
    %17 = arith.subf %16, %12 : vector<2x128xf32>
    %18 = math.exp %17 : vector<2x128xf32>
    %19 = arith.addf %13, %18 : vector<2x128xf32>
    %c0_i32 = arith.constant 0 : i32
    %20 = vector.broadcast %c0_i32 : i32 to vector<2x128xi32>
    %21 = arith.cmpi eq, %1, %20 : vector<2x128xi32>
    %22 = arith.select %21, %16, %14 : vector<2x128xi1>, vector<2x128xf32>
    %c0_20 = arith.constant 0 : index
    %c1_21 = arith.constant 1 : index
    %c0_22 = arith.constant 0 : index
    %c0_23 = arith.constant 0 : index
    %23 = vector.load %arg2[%c0_20, %c1_21, %c0_22, %c0_23] : memref<1x4x2x128xf32, #tpu.memory_space<vmem>>, vector<1x1x2x128xf32>
    %24 = vector.shape_cast %23 : vector<1x1x2x128xf32> to vector<2x128xf32>
    %25 = arith.subf %24, %12 : vector<2x128xf32>
    %26 = math.exp %25 : vector<2x128xf32>
    %27 = arith.addf %19, %26 : vector<2x128xf32>
    %c1_i32 = arith.constant 1 : i32
    %28 = vector.broadcast %c1_i32 : i32 to vector<2x128xi32>
    %29 = arith.cmpi eq, %1, %28 : vector<2x128xi32>
    %30 = arith.select %29, %24, %22 : vector<2x128xi1>, vector<2x128xf32>
    %c0_24 = arith.constant 0 : index
    %c2_25 = arith.constant 2 : index
    %c0_26 = arith.constant 0 : index
    %c0_27 = arith.constant 0 : index
    %31 = vector.load %arg2[%c0_24, %c2_25, %c0_26, %c0_27] : memref<1x4x2x128xf32, #tpu.memory_space<vmem>>, vector<1x1x2x128xf32>
    %32 = vector.shape_cast %31 : vector<1x1x2x128xf32> to vector<2x128xf32>
    %33 = arith.subf %32, %12 : vector<2x128xf32>
    %34 = math.exp %33 : vector<2x128xf32>
    %35 = arith.addf %27, %34 : vector<2x128xf32>
    %c2_i32 = arith.constant 2 : i32
    %36 = vector.broadcast %c2_i32 : i32 to vector<2x128xi32>
    %37 = arith.cmpi eq, %1, %36 : vector<2x128xi32>
    %38 = arith.select %37, %32, %30 : vector<2x128xi1>, vector<2x128xf32>
    %c0_28 = arith.constant 0 : index
    %c3_29 = arith.constant 3 : index
    %c0_30 = arith.constant 0 : index
    %c0_31 = arith.constant 0 : index
    %39 = vector.load %arg2[%c0_28, %c3_29, %c0_30, %c0_31] : memref<1x4x2x128xf32, #tpu.memory_space<vmem>>, vector<1x1x2x128xf32>
    %40 = vector.shape_cast %39 : vector<1x1x2x128xf32> to vector<2x128xf32>
    %41 = arith.subf %40, %12 : vector<2x128xf32>
    %42 = math.exp %41 : vector<2x128xf32>
    %43 = arith.addf %35, %42 : vector<2x128xf32>
    %c3_i32 = arith.constant 3 : i32
    %44 = vector.broadcast %c3_i32 : i32 to vector<2x128xi32>
    %45 = arith.cmpi eq, %1, %44 : vector<2x128xi32>
    %46 = arith.select %45, %40, %38 : vector<2x128xi1>, vector<2x128xf32>
    %47 = math.log %43 : vector<2x128xf32>
    %48 = arith.addf %12, %47 : vector<2x128xf32>
    %49 = tpu.iota {dimensions = array<i32: 0>} : vector<2x128xi32>
    %50 = tpu.iota {dimensions = array<i32: 1>} : vector<2x128xi32>
    %c2_i32_32 = arith.constant 2 : i32
    %51 = arith.muli %arg1, %c2_i32_32 : i32
    %52 = vector.broadcast %51 : i32 to vector<2x128xi32>
    %53 = arith.addi %52, %49 : vector<2x128xi32>
    %c128_i32 = arith.constant 128 : i32
    %54 = vector.broadcast %c128_i32 : i32 to vector<2x128xi32>
    %55 = arith.muli %53, %54 : vector<2x128xi32>
    %56 = arith.addi %55, %50 : vector<2x128xi32>
    %c255_i32 = arith.constant 255 : i32
    %57 = vector.broadcast %c255_i32 : i32 to vector<2x128xi32>
    %58 = arith.cmpi ne, %1, %57 : vector<2x128xi32>
    %c256_i32 = arith.constant 256 : i32
    %59 = vector.broadcast %c256_i32 : i32 to vector<2x128xi32>
    %60 = arith.cmpi slt, %56, %59 : vector<2x128xi32>
    %61 = arith.andi %58, %60 : vector<2x128xi1>
    %62 = arith.subf %48, %46 : vector<2x128xf32>
    %cst_33 = arith.constant 0.000000e+00 : f32
    %63 = vector.broadcast %cst_33 : f32 to vector<2x128xf32>
    %64 = arith.select %61, %62, %63 : vector<2x128xi1>, vector<2x128xf32>
    %65 = vector.shape_cast %64 : vector<2x128xf32> to vector<1x2x128xf32>
    %c0_34 = arith.constant 0 : index
    %c0_35 = arith.constant 0 : index
    %c0_36 = arith.constant 0 : index
    %66 = vector.load %arg4[%c0_34, %c0_35, %c0_36] : memref<1x2x128xf32, #tpu.memory_space<vmem>>, vector<1x2x128xf32>
    tpu.vector_store %arg4[%c0_34, %c0_35, %c0_36], %65 {strides = array<i32>} : memref<1x2x128xf32, #tpu.memory_space<vmem>>, vector<1x2x128xf32>,
    %cst_37 = arith.constant 0.356674939 : f32
    %67 = vector.broadcast %cst_37 : f32 to vector<2x128xf32>
    %68 = arith.cmpf ogt, %64, %67 : vector<2x128xf32>
    %69 = arith.andi %61, %68 : vector<2x128xi1>
    %cst_38 = arith.constant 0.000000e+00 : f32
    %70 = vector.broadcast %cst_38 : f32 to vector<2x128xf32>
    %71 = arith.select %69, %64, %70 : vector<2x128xi1>, vector<2x128xf32>
    %cst_39 = arith.constant dense<0.000000e+00> : vector<128xf32>
    %72 = vector.multi_reduction <add>, %71, %cst_39 [0] : vector<2x128xf32> to vector<128xf32>
    %73 = vector.shape_cast %72 : vector<128xf32> to vector<1x128xf32>
    %74 = arith.extui %69 : vector<2x128xi1> to vector<2x128xi32>
    %75 = arith.sitofp %74 : vector<2x128xi32> to vector<2x128xf32>
    %cst_40 = arith.constant dense<0.000000e+00> : vector<128xf32>
    %76 = vector.multi_reduction <add>, %75, %cst_40 [0] : vector<2x128xf32> to vector<128xf32>
    %77 = vector.shape_cast %76 : vector<128xf32> to vector<1x128xf32>
    %78 = arith.extui %61 : vector<2x128xi1> to vector<2x128xi32>
    %79 = arith.sitofp %78 : vector<2x128xi32> to vector<2x128xf32>
    %cst_41 = arith.constant dense<0.000000e+00> : vector<128xf32>
    %80 = vector.multi_reduction <add>, %79, %cst_41 [0] : vector<2x128xf32> to vector<128xf32>
    %81 = vector.shape_cast %80 : vector<128xf32> to vector<1x128xf32>
    %cst_42 = arith.constant 0.000000e+00 : f32
    %82 = vector.broadcast %cst_42 : f32 to vector<5x128xf32>
    %83 = tpu.concatenate %73, %77, %81, %82 in 0 : vector<1x128xf32>, vector<1x128xf32>, vector<1x128xf32>, vector<5x128xf32> -> vector<8x128xf32>
    %84 = vector.shape_cast %83 : vector<8x128xf32> to vector<1x1x8x128xf32>
    %c0_43 = arith.constant 0 : index
    %c0_44 = arith.constant 0 : index
    %c0_45 = arith.constant 0 : index
    %c0_46 = arith.constant 0 : index
    %85 = vector.load %arg5[%c0_43, %c0_44, %c0_45, %c0_46] : memref<1x1x8x128xf32, #tpu.memory_space<vmem>>, vector<1x1x8x128xf32>
    tpu.vector_store %arg5[%c0_43, %c0_44, %c0_45, %c0_46], %84 {strides = array<i32>} : memref<1x1x8x128xf32, #tpu.memory_space<vmem>>, vector<1x1x8x128xf32>,
    return
  }
  func.func @transform_0(%arg0: i32, %arg1: i32) -> (i32, i32, i32, i32) {
    %c0_i32 = arith.constant 0 : i32
    %c0_i32_0 = arith.constant 0 : i32
    %c0_i32_1 = arith.constant 0 : i32
    return %arg0, %c0_i32, %arg1, %c0_i32_0 : i32, i32, i32, i32
  }
  func.func @transform_1(%arg0: i32, %arg1: i32) -> (i32, i32, i32) {
    %c0_i32 = arith.constant 0 : i32
    %c0_i32_0 = arith.constant 0 : i32
    return %arg0, %arg1, %c0_i32 : i32, i32, i32
  }
  func.func @transform_2(%arg0: i32, %arg1: i32) -> (i32, i32, i32) {
    %c0_i32 = arith.constant 0 : i32
    %c0_i32_0 = arith.constant 0 : i32
    return %arg0, %arg1, %c0_i32 : i32, i32, i32
  }
  func.func @transform_3(%arg0: i32, %arg1: i32) -> (i32, i32, i32, i32) {
    %c0_i32 = arith.constant 0 : i32
    %c0_i32_0 = arith.constant 0 : i32
    %c0_i32_1 = arith.constant 0 : i32
    return %arg0, %arg1, %c0_i32, %c0_i32_0 : i32, i32, i32, i32
  }
}

</mosaic_0001>

<llo_original>
// kernel: tpu_custom_call.1
$region0: #{tpu_custom_call.1}
  #allocation0 [shape = 'u32[]', space=smem, size = 0x4, offset = 0x4, fixed_abs, tag = 'smem constant byte address 0x4 - core index']
  #allocation1 [shape = 'u32[144,128]{1,0:T(1,128)}', space=vmem, size = 0x12000, scoped, tag = 'internal scratch']
  %s0 = inlined_call_operand.hbm [shape: f32[2,4,2,128], index: 0, kind: input, shape index: {}]
  %s1 = inlined_call_operand.hbm [shape: s32[2,2,128], index: 1, kind: input, shape index: {}]
  %s2 = inlined_call_operand.hbm [shape: f32[2,2,128], index: 2, kind: output, shape index: {0}]
  %s3 = inlined_call_operand.hbm [shape: f32[2,1,8,128], index: 3, kind: output, shape index: {1}]
  %4 = xla_tuple %s2, %s3
  %s5 = sld [smem:[#allocation0]]
  $region57: #{tpu_custom_call.1} parent=0
    _
  %s7 = ssub.s32 1, %s5
  %s8 = scalar_select 0, %s7, %s5
  $region1: #{tpu_custom_call.1} parent=0
    #allocation2 [shape = 'u8[8192]{0}', space=vmem, size = 0x2000, scoped, tag = 'input window, operand 0']
    #allocation3 [shape = 's32[2]{0}', space=sflag, size = 0x8, scoped, tag = 'scoped memory for tpu_custom_call.1']
    #allocation4 [shape = 's32[2]{0}', space=sflag, size = 0x8, scoped, tag = 'scoped memory for tpu_custom_call.1']
    #allocation5 [shape = 'u8[2048]{0}', space=vmem, size = 0x800, scoped, tag = 'input window, operand 1']
    #allocation6 [shape = 's32[2]{0}', space=sflag, size = 0x8, scoped, tag = 'scoped memory for tpu_custom_call.1']
    #allocation7 [shape = 'u8[2048]{0}', space=vmem, size = 0x800, scoped, tag = 'output window, operand 0']
    #allocation8 [shape = 'u8[8192]{0}', space=vmem, size = 0x2000, scoped, tag = 'output window, operand 1']
    #allocation9 [shape = 's32[2]{0}', space=sflag, size = 0x8, scoped, tag = 'scoped memory for tpu_custom_call.1']
    %9 = vsyncpa [#allocation3], 0
    %s10 = scalar_lea.sflag [#allocation3], 1
    %11 = vsyncpa %s10, 0
    %12 = vsyncpa [#allocation6], 0
    %s13 = scalar_lea.sflag [#allocation6], 1
    %14 = vsyncpa %s13, 0
    %15 = vsyncpa [#allocation4], 0
    %s16 = scalar_lea.sflag [#allocation4], 1
    %17 = vsyncpa %s16, 0
    %18 = vsyncpa [#allocation9], 0
    %s19 = scalar_lea.sflag [#allocation9], 1
    %20 = vsyncpa %s19, 0
    loop: start=0, step=1, limit=4
    $region2: #{tpu_custom_call.1} parent=1 // loop_pre_header
      _
    $region3: #{tpu_custom_call.1} parent=1 // loop_header
      %s22 = sphi 0, %s26
      %p23 = scmp.ge.s32.totalorder %s22, 4
      %s29 = sphi 0, %s41
      %s30 = sphi 0, %s37
      %s31 = sphi 0, %s29
      %s32 = sphi 0, %s30
      %s33 = sphi 0, %s31
      %s34 = sphi 0, %s32
      %s46 = sphi 0, %s48
      %s49 = sphi 0, %s46
      %s50 = sphi 0, %s49
      %s66 = sphi 0, %s50
      %s74 = sphi 0, %s76
      %s77 = sphi 0, %s74
      %s78 = sphi 0, %s77
      %s94 = sphi 0, %s78
      %s102 = sphi 0, %s104
      %s105 = sphi 0, %s102
      %s106 = sphi 0, %s105
      %s122 = sphi 0, %s106
      %s130 = sphi 0, %s132
      %s133 = sphi 0, %s130
      %s134 = sphi 0, %s133
      %s150 = sphi 0, %s134
    $region4: #{tpu_custom_call.1} parent=1 // loop_header_branch
      %25 = sbr.rel (%p23) target = $region8
    $region5: #{tpu_custom_call.1} parent=1 // loop_body
      %s27 = ssub.s32 %s22, 1
      %s28 = ssub.s32 %s22, 2
      %s35 = sadd.s32 1, %s30
      %p36 = scmp.ge.s32.totalorder %s35, 1
      %s37 = scalar_select %p36, 0, %s35
      %s38 = sadd.s32 1, %s29
      %s39 = scalar_select %p36, %s38, %s29
      %p40 = scmp.ge.s32.totalorder %s39, 2
      %s41 = scalar_select %p40, 0, %s39
      %s42 = ssub.s32 %s29, %s41
      %s43 = ssub.s32 %s30, %s37
      %s44 = sor.u32 %s42, %s43
      %p45 = scmp.eq.s32.totalorder %s44, 0
      %s47 = sadd.s32 %s46, 1
      %s48 = scalar_select %p45, %s46, %s47
      %p51 = pneg %p45
      %p52 = scmp.eq.s32.totalorder %s22, 1
      %p53 = por %p51, %p52
      %p54 = scmp.ne.s32.totalorder %s46, %s49
      %p55 = scmp.eq.s32.totalorder %s22, 0
      %p56 = por %p54, %p55
      %p57 = scmp.ne.s32.totalorder %s46, %s49
      %p58 = scmp.eq.s32.totalorder %s27, 1
      %p59 = por %p57, %p58
      %p60 = scmp.ne.s32.totalorder %s49, %s50
      %p61 = scmp.eq.s32.totalorder %s27, 0
      %p62 = por %p60, %p61
      %p63 = scmp.ne.s32.totalorder %s49, %s50
      %p64 = scmp.eq.s32.totalorder %s28, 1
      %p65 = por %p63, %p64
      %p67 = scmp.ne.s32.totalorder %s50, %s66
      %p68 = scmp.eq.s32.totalorder %s28, 0
      %p69 = por %p67, %p68
      %s70 = ssub.s32 %s29, %s41
      %s71 = ssub.s32 %s30, %s37
      %s72 = sor.u32 %s70, %s71
      %p73 = scmp.eq.s32.totalorder %s72, 0
      %s75 = sadd.s32 %s74, 1
      %s76 = scalar_select %p73, %s74, %s75
      %p79 = pneg %p73
      %p80 = scmp.eq.s32.totalorder %s22, 1
      %p81 = por %p79, %p80
      %p82 = scmp.ne.s32.totalorder %s74, %s77
      %p83 = scmp.eq.s32.totalorder %s22, 0
      %p84 = por %p82, %p83
      %p85 = scmp.ne.s32.totalorder %s74, %s77
      %p86 = scmp.eq.s32.totalorder %s27, 1
      %p87 = por %p85, %p86
      %p88 = scmp.ne.s32.totalorder %s77, %s78
      %p89 = scmp.eq.s32.totalorder %s27, 0
      %p90 = por %p88, %p89
      %p91 = scmp.ne.s32.totalorder %s77, %s78
      %p92 = scmp.eq.s32.totalorder %s28, 1
      %p93 = por %p91, %p92
      %p95 = scmp.ne.s32.totalorder %s78, %s94
      %p96 = scmp.eq.s32.totalorder %s28, 0
      %p97 = por %p95, %p96
      %s98 = ssub.s32 %s29, %s41
      %s99 = ssub.s32 %s30, %s37
      %s100 = sor.u32 %s98, %s99
      %p101 = scmp.eq.s32.totalorder %s100, 0
      %s103 = sadd.s32 %s102, 1
      %s104 = scalar_select %p101, %s102, %s103
      %p107 = pneg %p101
      %p108 = scmp.eq.s32.totalorder %s22, 1
      %p109 = por %p107, %p108
      %p110 = scmp.ne.s32.totalorder %s102, %s105
      %p111 = scmp.eq.s32.totalorder %s22, 0
      %p112 = por %p110, %p111
      %p113 = scmp.ne.s32.totalorder %s102, %s105
      %p114 = scmp.eq.s32.totalorder %s27, 1
      %p115 = por %p113, %p114
      %p116 = scmp.ne.s32.totalorder %s105, %s106
      %p117 = scmp.eq.s32.totalorder %s27, 0
      %p118 = por %p116, %p117
      %p119 = scmp.ne.s32.totalorder %s105, %s106
      %p120 = scmp.eq.s32.totalorder %s28, 1
      %p121 = por %p119, %p120
      %p123 = scmp.ne.s32.totalorder %s106, %s122
      %p124 = scmp.eq.s32.totalorder %s28, 0
      %p125 = por %p123, %p124
      %s126 = ssub.s32 %s29, %s41
      %s127 = ssub.s32 %s30, %s37
      %s128 = sor.u32 %s126, %s127
      %p129 = scmp.eq.s32.totalorder %s128, 0
      %s131 = sadd.s32 %s130, 1
      %s132 = scalar_select %p129, %s130, %s131
      %p135 = pneg %p129
      %p136 = scmp.eq.s32.totalorder %s22, 1
      %p137 = por %p135, %p136
      %p138 = scmp.ne.s32.totalorder %s130, %s133
      %p139 = scmp.eq.s32.totalorder %s22, 0
      %p140 = por %p138, %p139
      %p141 = scmp.ne.s32.totalorder %s130, %s133
      %p142 = scmp.eq.s32.totalorder %s27, 1
      %p143 = por %p141, %p142
      %p144 = scmp.ne.s32.totalorder %s133, %s134
      %p145 = scmp.eq.s32.totalorder %s27, 0
      %p146 = por %p144, %p145
      %p147 = scmp.ne.s32.totalorder %s133, %s134
      %p148 = scmp.eq.s32.totalorder %s28, 1
      %p149 = por %p147, %p148
      %p151 = scmp.ne.s32.totalorder %s134, %s150
      %p152 = scmp.eq.s32.totalorder %s28, 0
      %p153 = por %p151, %p152
      %p154 = scmp.le.s32.totalorder 1, %s22
      %p155 = scmp.lt.s32.totalorder %s22, 3
      %p156 = pnand %p154, %p155
      %p157 = pneg %p156
      // Predicated region
      $region9: #{tpu_custom_call.1} parent=5 // pred_check
        _
      $region10: #{tpu_custom_call.1} parent=5 // pred_check_branch
        %159 = sbr.rel (%p156) target = $region12
      $region11: #{tpu_custom_call.1} parent=5 // pred_region
        %s160 = ssub.s32 %s22, 1
      $region12: #{tpu_custom_call.1} parent=5 // pred_fallthru
        _
      %p161 = scmp.lt.s32.totalorder %s22, 2
      // Predicated region
      $region13: #{tpu_custom_call.1} parent=5 // pred_check
        %p162 = pneg %p161
      $region14: #{tpu_custom_call.1} parent=5 // pred_check_branch
        %164 = sbr.rel (%p162) target = $region16
      $region15: #{tpu_custom_call.1} parent=5 // pred_region
        // Predicated region
        $region17: #{tpu_custom_call.1} parent=15 // pred_check
          %p165 = pneg %p56
        $region18: #{tpu_custom_call.1} parent=15 // pred_check_branch
          %167 = sbr.rel (%p165) target = $region20
        $region19: #{tpu_custom_call.1} parent=15 // pred_region
          %s168 = sand.u32 %s46, 1
          %s169 = scalar_lea.sflag [#allocation3], %s168
          %s170 = sand.u32 %s46, 1
          %s171 = smul.addr %s170, 8
          %s172 = scalar_lea.vmem [#allocation2], %s171
          %s174 = ssub.s32 128, 128
          %175 = vsyncadd %s169, %s174
          %s176 = smul.addr %s29, 4
          %s177 = sadd.s32 %s30, %s176
          %s178 = smul.addr %s177, 32
          %s179 = scalar_lea.hbm %s0, %s178
          %s180 = sshll.u32 %s172, 4
          %s181 = int_to_ptr.vmem [resolvable:$true] %s180
          %186 = dma.hbm_to_vmem [thread:$0]  %s179, 128, %s181, %s169, 32, 32, 2
        $region20: #{tpu_custom_call.1} parent=15 // pred_fallthru
          _
        // Predicated region
        $region21: #{tpu_custom_call.1} parent=15 // pred_check
          %p187 = pneg %p84
        $region22: #{tpu_custom_call.1} parent=15 // pred_check_branch
          %189 = sbr.rel (%p187) target = $region24
        $region23: #{tpu_custom_call.1} parent=15 // pred_region
          %s190 = sand.u32 %s74, 1
          %s191 = scalar_lea.sflag [#allocation6], %s190
          %s192 = sand.u32 %s74, 1
          %s193 = smul.addr %s192, 2
          %s194 = scalar_lea.vmem [#allocation5], %s193
          %s196 = ssub.s32 32, 32
          %197 = vsyncadd %s191, %s196
          %s198 = sadd.s32 %s30, %s29
          %s199 = smul.addr %s198, 32
          %s200 = scalar_lea.hbm %s1, %s199
          %s202 = sshll.u32 %s194, 4
          %s203 = int_to_ptr.vmem [resolvable:$true] %s202
          %205 = dma.hbm_to_vmem [thread:$0]  %s200, 32, %s203, %s191
        $region24: #{tpu_custom_call.1} parent=15 // pred_fallthru
          _
      $region16: #{tpu_custom_call.1} parent=5 // pred_fallthru
        _
      %p206 = scmp.le.s32.totalorder 1, %s22
      %p207 = scmp.lt.s32.totalorder %s22, 3
      %p208 = pnand %p206, %p207
      %p209 = pneg %p208
      // Predicated region
      $region25: #{tpu_custom_call.1} parent=5 // pred_check
        _
      $region26: #{tpu_custom_call.1} parent=5 // pred_check_branch
        %211 = sbr.rel (%p208) target = $region28
      $region27: #{tpu_custom_call.1} parent=5 // pred_region
        %s212 = ssub.s32 %s22, 1
        %s213 = sand.u32 %s49, 1
        %s214 = scalar_lea.sflag [#allocation3], %s213
        %s215 = sand.u32 %s49, 1
        %s216 = smul.addr %s215, 8
        %s217 = scalar_lea.vmem [#allocation2], %s216
        // Predicated region
        $region29: #{tpu_custom_call.1} parent=27 // pred_check
          %p218 = pneg %p62
        $region30: #{tpu_custom_call.1} parent=27 // pred_check_branch
          %220 = sbr.rel (%p218) target = $region32
        $region31: #{tpu_custom_call.1} parent=27 // pred_region
          %221 = dma.done %s214, 128
        $region32: #{tpu_custom_call.1} parent=27 // pred_fallthru
          _
        %s222 = sand.u32 %s77, 1
        %s223 = scalar_lea.sflag [#allocation6], %s222
        %s224 = sand.u32 %s77, 1
        %s225 = smul.addr %s224, 2
        %s226 = scalar_lea.vmem [#allocation5], %s225
        // Predicated region
        $region33: #{tpu_custom_call.1} parent=27 // pred_check
          %p227 = pneg %p90
        $region34: #{tpu_custom_call.1} parent=27 // pred_check_branch
          %229 = sbr.rel (%p227) target = $region36
        $region35: #{tpu_custom_call.1} parent=27 // pred_region
          %230 = dma.done %s223, 32
        $region36: #{tpu_custom_call.1} parent=27 // pred_fallthru
          _
        %s231 = sand.u32 %s49, 1
        %s232 = scalar_lea.sflag [#allocation3], %s231
        %s233 = sand.u32 %s49, 1
        %s234 = smul.addr %s233, 8
        %s235 = scalar_lea.vmem [#allocation2], %s234
        %p236 = pneg %p62
        %p237 = pneg %p59
        %s238 = sand.u32 %s77, 1
        %s239 = scalar_lea.sflag [#allocation6], %s238
        %s240 = sand.u32 %s77, 1
        %s241 = smul.addr %s240, 2
        %s242 = scalar_lea.vmem [#allocation5], %s241
        %p243 = pneg %p90
        %p244 = pneg %p87
        %p245 = pneg %p118
        %p246 = pneg %p115
        %s247 = sand.u32 %s105, 1
        %s248 = scalar_lea.sflag [#allocation4], %s247
        %s249 = sand.u32 %s105, 1
        %s250 = smul.addr %s249, 2
        %s251 = scalar_lea.vmem [#allocation7], %s250
        %p252 = pneg %p146
        %p253 = pneg %p143
        %s254 = sand.u32 %s133, 1
        %s255 = scalar_lea.sflag [#allocation9], %s254
        %s256 = sand.u32 %s133, 1
        %s257 = smul.addr %s256, 8
        %s258 = scalar_lea.vmem [#allocation8], %s257
        %v259 = vld [vmem:[%s226] sm:$0x3]
        %v260 = vld [vmem:[%s217] sm:$0x3]
        %s261 = scalar_lea.vmem %s217, 2 [#allocation2]
        %v262 = vld [vmem:[%s261] sm:$0x3]
        %v263 = vmax.f32 %v260, %v262
        %s264 = scalar_lea.vmem %s217, 4 [#allocation2]
        %v265 = vld [vmem:[%s264] sm:$0x3]
        %v266 = vmax.f32 %v263, %v265
        %s267 = scalar_lea.vmem %s217, 6 [#allocation2]
        %v268 = vld [vmem:[%s267] sm:$0x3]
        %v269 = vmax.f32 %v266, %v268
        %v270 = vsub.f32 %v260, %v269
        %v271 = vmul.f32 %v270, 1.442695
        %v272 = vpow.pop %v271
        %v273 = vadd.f32 %v272, 0.0
        %vm274 = vcmp.eq.s32.totalorder %v259, 0
        %v275 = vsel %vm274, %v260, 0.0
        %v276 = vsub.f32 %v262, %v269
        %v277 = vmul.f32 %v276, 1.442695
        %v278 = vpow.pop %v277
        %v279 = vadd.f32 %v273, %v278
        %vm280 = vcmp.eq.s32.totalorder %v259, 1
        %v281 = vsel %vm280, %v262, %v275
        %v282 = vsub.f32 %v265, %v269
        %v283 = vmul.f32 %v282, 1.442695
        %v284 = vpow.pop %v283
        %v285 = vadd.f32 %v279, %v284
        %vm286 = vcmp.eq.s32.totalorder %v259, 2
        %v287 = vsel %vm286, %v265, %v281
        %v288 = vsub.f32 %v268, %v269
        %v289 = vmul.f32 %v288, 1.442695
        %v290 = vpow.pop %v289
        %v291 = vadd.f32 %v285, %v290
        %vm292 = vcmp.eq.s32.totalorder %v259, 3
        %v293 = vsel %vm292, %v268, %v287
        %v294 = vlog2.pop %v291
        %v295 = vmul.f32 %v294, 0.6931472
        %v296 = vadd.f32 %v269, %v295
        %v297 = vlaneseq
        %v298 = vshrl.u32 %v297, 7
        %v299 = vlaneseq
        %v300 = vand.u32 %v299, 127
        %s301 = smul.u32 %s32, 2
        %v302 = vstv %s301
        %v303 = vadd.s32 %v302, %v298
        %v304 = vmul.u32 %v303, 128
        %v305 = vadd.s32 %v304, %v300
        %vm306 = vcmp.ne.s32.totalorder %v259, 255
        %vm307 = vcmp.lt.s32.totalorder %v305, 256
        %vm308 = vmand %vm306, %vm307
        %v309 = vsub.f32 %v296, %v293
        %v310 = vsel %vm308, %v309, 0.0
        %311 = vst [vmem:[%s251] sm:$0x3] %v310
        %vm312 = vcmp.gt.f32.partialorder %v310, 0.35667494
        %vm313 = vmand %vm308, %vm312
        %v314 = vsel %vm313, %v310, 0.0
        %vm315 = vcmask 1041408
        %v316 = vsel %vm315, %v314, 0.0
        %v317 = vrot.slane %v316, 4
        %v318 = vadd.f32 %v316, %v317
        %v319 = vrot.slane %v318, 2
        %v320 = vadd.f32 %v318, %v319
        %v321 = vrot.slane %v320, 1
        %v322 = vadd.f32 %v320, %v321
        %v323 = vsel %vm313, 1, 0
        %v324 = vcvt.s32.f32 %v323
        %v325 = vsel %vm315, %v324, 0.0
        %v326 = vrot.slane %v325, 4
        %v327 = vadd.f32 %v325, %v326
        %v328 = vrot.slane %v327, 2
        %v329 = vadd.f32 %v327, %v328
        %v330 = vrot.slane %v329, 1
        %v331 = vadd.f32 %v329, %v330
        %v332 = vsel %vm308, 1, 0
        %v333 = vcvt.s32.f32 %v332
        %v334 = vsel %vm315, %v333, 0.0
        %v335 = vrot.slane %v334, 4
        %v336 = vadd.f32 %v334, %v335
        %v337 = vrot.slane %v336, 2
        %v338 = vadd.f32 %v336, %v337
        %v339 = vrot.slane %v338, 1
        %v340 = vadd.f32 %v338, %v339
        %vm341 = vcmask 1040384
        %v342 = vsel %vm341, %v322, %v331
        %v343 = vsel %vm315, %v342, %v340
        %vm344 = vcmask 1042432
        %v345 = vsel %vm344, %v343, 0.0
        %346 = vst [vmem:[%s258] sm:$0xff] %v345
        %s347 = sand.u32 %s105, 1
        %s348 = scalar_lea.sflag [#allocation4], %s347
        %s349 = sand.u32 %s105, 1
        %s350 = smul.addr %s349, 2
        %s351 = scalar_lea.vmem [#allocation7], %s350
        %s352 = sand.u32 %s133, 1
        %s353 = scalar_lea.sflag [#allocation9], %s352
        %s354 = sand.u32 %s133, 1
        %s355 = smul.addr %s354, 8
        %s356 = scalar_lea.vmem [#allocation8], %s355
        // Predicated region
        $region37: #{tpu_custom_call.1} parent=27 // pred_check
          %p357 = pneg %p115
        $region38: #{tpu_custom_call.1} parent=27 // pred_check_branch
          %359 = sbr.rel (%p357) target = $region40
        $region39: #{tpu_custom_call.1} parent=27 // pred_region
          %s361 = ssub.s32 32, 32
          %362 = vsyncadd %s348, %s361
          %s363 = sadd.s32 %s32, %s31
          %s364 = smul.addr %s363, 32
          %s365 = scalar_lea.hbm %s2, %s364
          %s367 = sshll.u32 %s351, 4
          %s368 = int_to_ptr.vmem [resolvable:$true] %s367
          %370 = dma.vmem_to_hbm [thread:$0]  %s368, 32, %s365, %s348
        $region40: #{tpu_custom_call.1} parent=27 // pred_fallthru
          _
        // Predicated region
        $region41: #{tpu_custom_call.1} parent=27 // pred_check
          %p371 = pneg %p143
        $region42: #{tpu_custom_call.1} parent=27 // pred_check_branch
          %373 = sbr.rel (%p371) target = $region44
        $region43: #{tpu_custom_call.1} parent=27 // pred_region
          %s375 = ssub.s32 128, 128
          %376 = vsyncadd %s353, %s375
          %s377 = sadd.s32 %s32, %s31
          %s378 = smul.addr %s377, 128
          %s379 = scalar_lea.hbm %s3, %s378
          %s381 = sshll.u32 %s356, 4
          %s382 = int_to_ptr.vmem [resolvable:$true] %s381
          %384 = dma.vmem_to_hbm [thread:$0]  %s382, 128, %s379, %s353
        $region44: #{tpu_custom_call.1} parent=27 // pred_fallthru
          _
      $region28: #{tpu_custom_call.1} parent=5 // pred_fallthru
        _
      %p385 = scmp.le.s32.totalorder 2, %s22
      // Predicated region
      $region45: #{tpu_custom_call.1} parent=5 // pred_check
        %p386 = pneg %p385
      $region46: #{tpu_custom_call.1} parent=5 // pred_check_branch
        %388 = sbr.rel (%p386) target = $region48
      $region47: #{tpu_custom_call.1} parent=5 // pred_region
        %s389 = ssub.s32 %s22, 2
        // Predicated region
        $region49: #{tpu_custom_call.1} parent=47 // pred_check
          %p390 = pneg %p121
        $region50: #{tpu_custom_call.1} parent=47 // pred_check_branch
          %392 = sbr.rel (%p390) target = $region52
        $region51: #{tpu_custom_call.1} parent=47 // pred_region
          %s393 = sand.u32 %s106, 1
          %s394 = scalar_lea.sflag [#allocation4], %s393
          %s395 = sand.u32 %s106, 1
          %s396 = smul.addr %s395, 2
          %s397 = scalar_lea.vmem [#allocation7], %s396
          %398 = dma.done %s394, 32
        $region52: #{tpu_custom_call.1} parent=47 // pred_fallthru
          _
        // Predicated region
        $region53: #{tpu_custom_call.1} parent=47 // pred_check
          %p399 = pneg %p149
        $region54: #{tpu_custom_call.1} parent=47 // pred_check_branch
          %401 = sbr.rel (%p399) target = $region56
        $region55: #{tpu_custom_call.1} parent=47 // pred_region
          %s402 = sand.u32 %s134, 1
          %s403 = scalar_lea.sflag [#allocation9], %s402
          %s404 = sand.u32 %s134, 1
          %s405 = smul.addr %s404, 8
          %s406 = scalar_lea.vmem [#allocation8], %s405
          %407 = dma.done %s403, 128
        $region56: #{tpu_custom_call.1} parent=47 // pred_fallthru
          _
      $region48: #{tpu_custom_call.1} parent=5 // pred_fallthru
        _
    $region6: #{tpu_custom_call.1} parent=1 // loop_footer
      %s26 = sadd.s32 1, %s22
    $region7: #{tpu_custom_call.1} parent=1 // loop_footer_branch
      %21 = sbr.rel target = $region3
    $region8: #{tpu_custom_call.1} parent=1 // loop_exit
      _
    %408 = vsyncpa [#allocation3], 1
    %s409 = scalar_lea.sflag [#allocation3], 1
    %410 = vsyncpa %s409, 1
    %411 = vsyncpa [#allocation6], 1
    %s412 = scalar_lea.sflag [#allocation6], 1
    %413 = vsyncpa %s412, 1
    %414 = vsyncpa [#allocation4], 1
    %s415 = scalar_lea.sflag [#allocation4], 1
    %416 = vsyncpa %s415, 1
    %417 = vsyncpa [#allocation9], 1
    %s418 = scalar_lea.sflag [#allocation9], 1
    %419 = vsyncpa %s418, 1

</llo_original>
